<compile_context>
chip_gen: v6e
topology: v6e:2x2x1
jax: 0.10.0
libtpu: 0.0.40
codegen_flags: <defaults>
</compile_context>

<pallas_src>
import functools

import jax
import jax.numpy as jnp
import numpy as np
from jax.experimental import pallas as pl
from jax.experimental.pallas import tpu as pltpu


def _masked_ce_kernel(logits_ref, target_ref, mask_ref,
                      loss_out_ref, mask_out_ref, *,
                      hw, tile_cols, n_splits, tiles_per_split, needs_valid):
    """Class-major masked cross-entropy over one (C, TILE) column tile.

    logits_ref : (C, TILE)  input dtype (cast to f32 here)
    target_ref : (1, TILE)  int32
    mask_ref   : (1, TILE)  int8 / float
    loss_out_ref, mask_out_ref : (1, TILE) f32 per-row partial sums, resident
        across the tile (reduction) grid axis.
    """
    t = pl.program_id(1)

    # Accumulator outputs: same block across the tile axis -> resident.
    @pl.when(t == 0)
    def _():
        loss_out_ref[...] = jnp.zeros_like(loss_out_ref)
        mask_out_ref[...] = jnp.zeros_like(mask_out_ref)

    x = logits_ref[...].astype(jnp.float32)            # (C, T)
    tgt = target_ref[...]                              # (1, T) int32
    msk = mask_ref[...].astype(jnp.float32)            # (1, T) f32 (in-kernel cast)

    num_classes, tcols = x.shape

    # Stable log-sum-exp over the class (leading / sublane) axis.
    m = jnp.max(x, axis=0, keepdims=True)               # (1, T)
    lse = jnp.log(jnp.sum(jnp.exp(x - m), axis=0, keepdims=True)) + m

    # Gather the target logit via a one-hot select (no dynamic gather on TPU).
    cls = jax.lax.broadcasted_iota(jnp.int32, (num_classes, tcols), 0)
    tgt_logit = jnp.sum(jnp.where(cls == tgt, x, 0.0), axis=0, keepdims=True)

    per_col_loss = lse - tgt_logit                       # (1, T) CE, no reduction
    masked_loss_col = per_col_loss * msk

    if not needs_valid:
        # Every tile is fully in range: no per-column validity logic at all.
        loss_out_ref[...] += masked_loss_col
        mask_out_ref[...] += msk
    else:
        # Logical column offset of this tile (uses the *unclamped* block idx,
        # so fully out-of-range padded-split tiles contribute exactly zero).
        if n_splits > 1:
            split = pl.program_id(0) % n_splits
            base_col = (split * tiles_per_split + t) * tile_cols
        else:
            base_col = t * tile_cols

        is_full = base_col + tile_cols <= hw

        @pl.when(is_full)
        def _():  # fast path: full tile, no masking ops
            loss_out_ref[...] += masked_loss_col
            mask_out_ref[...] += msk

        @pl.when(jnp.logical_not(is_full))
        def _():  # partial / padded tile: zero out-of-range columns
            col = jax.lax.broadcasted_iota(jnp.int32, (1, tcols), 1) + base_col
            valid = col < hw
            # jnp.where (not multiply) so garbage/NaN in invalid columns
            # cannot poison the sums.
            loss_out_ref[...] += jnp.where(valid, masked_loss_col, 0.0)
            mask_out_ref[...] += jnp.where(valid, msk, 0.0)


def _vmem_budget_and_limit():
    """Generation-aware VMEM budget (for tile sizing) and scoped limit."""
    try:
        cap = int(pltpu.get_tpu_info().vmem_capacity_bytes)
    except Exception:
        cap = 64 * 1024 * 1024                      # conservative fallback
    if cap <= 64 * 1024 * 1024:                     # v7x-class: 64 MiB / TC
        budget = 16 * 1024 * 1024
        limit = 40 * 1024 * 1024
    else:                                           # v5e / v6e: 128 MiB
        budget = 24 * 1024 * 1024
        limit = 48 * 1024 * 1024
    return budget, limit


def _pick_tile_cols(hw, num_classes, logit_itemsize, mask_itemsize, budget):
    """Largest lane-dense tile that fits the VMEM budget.

    Accounts for: double-buffered logits + int32 target + mask inputs,
    the two resident f32 accumulator outputs (double-buffered), and an
    allowance of ~4 f32 (C, T) in-kernel temporaries (cast, exp, iota,
    one-hot select)."""
    per_col = 2 * (num_classes * logit_itemsize + 4 + mask_itemsize)  # inputs x2
    per_col += 2 * 2 * 4                                              # 2 f32 accumulators x2
    per_col += 4 * num_classes * 4 + 32                               # in-kernel temps
    max_cols = max(128, budget // per_col)
    tile = min(int(max_cols), 32 * 1024)            # review: 32768-65536 for small C
    tile = max(128, (tile // 128) * 128)
    if hw <= tile:
        return hw          # full-extent block: always layout-legal
    return tile


def masked_loss(value, target, mask):
    """value: (B, C, H, W) float logits; target: (B, H, W) int; mask: (B, H, W)."""
    B, C, H, W = value.shape
    HW = H * W

    # Free, copy-less reshapes: class-major layout (pixel axis on lanes).
    logits = value.reshape(B, C, HW)

    tgt = target.reshape(B, 1, HW)
    if tgt.dtype != jnp.int32:
        tgt = tgt.astype(jnp.int32)

    msk = mask.reshape(B, 1, HW)
    if msk.dtype == jnp.bool_:
        msk = msk.astype(jnp.int8)     # 1 B/px on the wire; -> f32 inside kernel

    budget, vmem_limit = _vmem_budget_and_limit()
    tile_cols = _pick_tile_cols(HW, C,
                                jnp.dtype(value.dtype).itemsize,
                                jnp.dtype(msk.dtype).itemsize,
                                budget)
    num_tiles = int(pl.cdiv(HW, tile_cols))

    # Split the pixel axis into 2 "parallel" rows when the batch alone cannot
    # feed both v7x TensorCores (odd / unit B).  Free on single-TC chips.
    n_splits = 2 if (B % 2 == 1 and num_tiles >= 2) else 1
    tiles_per_split = int(pl.cdiv(num_tiles, n_splits))
    P = B * n_splits
    needs_valid = (n_splits * tiles_per_split * tile_cols) != HW

    kernel = functools.partial(
        _masked_ce_kernel, hw=HW, tile_cols=tile_cols,
        n_splits=n_splits, tiles_per_split=tiles_per_split,
        needs_valid=needs_valid)

    if n_splits == 1:
        def in_map(p, t):
            return (p, 0, t)
    else:
        def in_map(p, t):
            # Clamp padded-split block indices into range; their contribution
            # is zeroed inside the kernel via the validity mask.
            blk = jnp.minimum((p % n_splits) * tiles_per_split + t,
                              num_tiles - 1)
            return (p // n_splits, 0, blk)

    out_map = lambda p, t: (p, 0, 0)

    loss_part, mask_part = pl.pallas_call(
        kernel,
        out_shape=(jax.ShapeDtypeStruct((P, 1, tile_cols), jnp.float32),
                   jax.ShapeDtypeStruct((P, 1, tile_cols), jnp.float32)),
        grid_spec=pltpu.PrefetchScalarGridSpec(
            num_scalar_prefetch=0,
            grid=(P, tiles_per_split),
            in_specs=[
                pl.BlockSpec((None, C, tile_cols), in_map),
                pl.BlockSpec((None, 1, tile_cols), in_map),
                pl.BlockSpec((None, 1, tile_cols), in_map),
            ],
            out_specs=[
                pl.BlockSpec((None, 1, tile_cols), out_map),
                pl.BlockSpec((None, 1, tile_cols), out_map),
            ],
        ),
        compiler_params=pltpu.CompilerParams(
            dimension_semantics=("parallel", "arbitrary"),
            vmem_limit_bytes=vmem_limit),
    )(logits, tgt, msk)

    # Tiny wrapper-side reductions + final division.
    # NOTE: mask.sum() == 0 yields NaN/inf, matching PyTorch's behavior.
    return jnp.sum(loss_part) / jnp.sum(mask_part)


def _reference(value, target, mask):
    # Pure-JAX reference mirroring torch.nn.CrossEntropyLoss(reduction='none').
    logp = jax.nn.log_softmax(value.astype(jnp.float32), axis=1)       # (B,C,H,W)
    ce = -jnp.take_along_axis(logp, target[:, None].astype(jnp.int32),
                              axis=1)[:, 0]                            # (B,H,W)
    m = mask.astype(jnp.float32)
    return (ce * m).sum() / m.sum()


if __name__ == "__main__":
    key = jax.random.PRNGKey(0)
    k1, k2, k3 = jax.random.split(key, 3)

    B, C, H, W = 2, 10, 16, 16
    value = jax.random.normal(k1, (B, C, H, W), dtype=jnp.float32)
    target = jax.random.randint(k2, (B, H, W), 0, C, dtype=jnp.int32)
    mask = (jax.random.uniform(k3, (B, H, W)) > 0.3)       # bool mask

    out = masked_loss(value, target, mask)
    out = jax.block_until_ready(out)

    ref = jax.block_until_ready(_reference(value, target, mask))
    assert np.allclose(np.asarray(out), np.asarray(ref), rtol=1e-5, atol=1e-5), (
        out, ref)

    print("KERNEL_OK")
</pallas_src>

<mosaic_0001>
module attributes {stable_mosaic.version = 11 : i64} {
  func.func @_masked_ce_kernel(%arg0: i32, %arg1: i32, %arg2: memref<1x10x256xf32, #tpu.memory_space<vmem>>, %arg3: memref<1x1x256xi32, #tpu.memory_space<vmem>>, %arg4: memref<1x1x256xi8, #tpu.memory_space<vmem>>, %arg5: memref<1x1x256xf32, #tpu.memory_space<vmem>>, %arg6: memref<1x1x256xf32, #tpu.memory_space<vmem>>) attributes {dimension_semantics = [#tpu.dimension_semantics<parallel>, #tpu.dimension_semantics<arbitrary>], iteration_bounds = array<i64: 2, 1>, scalar_prefetch = 0 : i64, scratch_operands = 0 : i64, tpu.core_type = #tpu.core_type<tc>, window_params = [{transform_indices = @transform_0, window_bounds = array<i64: 1, 10, 256>}, {transform_indices = @transform_1, window_bounds = array<i64: 1, 1, 256>}, {transform_indices = @transform_2, window_bounds = array<i64: 1, 1, 256>}, {transform_indices = @transform_3, window_bounds = array<i64: 1, 1, 256>}, {transform_indices = @transform_4, window_bounds = array<i64: 1, 1, 256>}]} {
    %c0_i32 = arith.constant 0 : i32
    %0 = arith.cmpi eq, %arg1, %c0_i32 : i32
    %1 = arith.extui %0 : i1 to i32
    %c0_i32_0 = arith.constant 0 : i32
    %2 = arith.cmpi ne, %1, %c0_i32_0 : i32
    scf.if %2 {
      %cst_24 = arith.constant 0.000000e+00 : f32
      %40 = vector.broadcast %cst_24 : f32 to vector<1x256xf32>
      %c0_25 = arith.constant 0 : index
      %c0_26 = arith.constant 0 : index
      %c0_27 = arith.constant 0 : index
      %41 = vector.load %arg5[%c0_25, %c0_26, %c0_27] : memref<1x1x256xf32, #tpu.memory_space<vmem>>, vector<1x1x256xf32>
      %42 = vector.shape_cast %41 : vector<1x1x256xf32> to vector<1x256xf32>
      %43 = vector.shape_cast %40 : vector<1x256xf32> to vector<1x1x256xf32>
      tpu.vector_store %arg5[%c0_25, %c0_26, %c0_27], %43 {strides = array<i32>} : memref<1x1x256xf32, #tpu.memory_space<vmem>>, vector<1x1x256xf32>,
      %cst_28 = arith.constant 0.000000e+00 : f32
      %44 = vector.broadcast %cst_28 : f32 to vector<1x256xf32>
      %c0_29 = arith.constant 0 : index
      %c0_30 = arith.constant 0 : index
      %c0_31 = arith.constant 0 : index
      %45 = vector.load %arg6[%c0_29, %c0_30, %c0_31] : memref<1x1x256xf32, #tpu.memory_space<vmem>>, vector<1x1x256xf32>
      %46 = vector.shape_cast %45 : vector<1x1x256xf32> to vector<1x256xf32>
      %47 = vector.shape_cast %44 : vector<1x256xf32> to vector<1x1x256xf32>
      tpu.vector_store %arg6[%c0_29, %c0_30, %c0_31], %47 {strides = array<i32>} : memref<1x1x256xf32, #tpu.memory_space<vmem>>, vector<1x1x256xf32>,
    } else {
    }
    %c0 = arith.constant 0 : index
    %c0_1 = arith.constant 0 : index
    %c0_2 = arith.constant 0 : index
    %3 = vector.load %arg2[%c0, %c0_1, %c0_2] : memref<1x10x256xf32, #tpu.memory_space<vmem>>, vector<1x10x256xf32>
    %4 = vector.shape_cast %3 : vector<1x10x256xf32> to vector<10x256xf32>
    %c0_3 = arith.constant 0 : index
    %c0_4 = arith.constant 0 : index
    %c0_5 = arith.constant 0 : index
    %5 = vector.load %arg3[%c0_3, %c0_4, %c0_5] : memref<1x1x256xi32, #tpu.memory_space<vmem>>, vector<1x1x256xi32>
    %6 = vector.shape_cast %5 : vector<1x1x256xi32> to vector<1x256xi32>
    %c0_6 = arith.constant 0 : index
    %c0_7 = arith.constant 0 : index
    %c0_8 = arith.constant 0 : index
    %7 = vector.load %arg4[%c0_6, %c0_7, %c0_8] : memref<1x1x256xi8, #tpu.memory_space<vmem>>, vector<1x1x256xi8>
    %8 = vector.shape_cast %7 : vector<1x1x256xi8> to vector<1x256xi8>
    %9 = arith.sitofp %8 : vector<1x256xi8> to vector<1x256xf32>
    %cst = arith.constant dense<0xFF800000> : vector<256xf32>
    %10 = vector.multi_reduction <maximumf>, %4, %cst [0] : vector<10x256xf32> to vector<256xf32>
    %11 = vector.shape_cast %10 : vector<256xf32> to vector<1x256xf32>
    %12 = vector.broadcast %11 : vector<1x256xf32> to vector<10x256xf32>
    %13 = arith.subf %4, %12 : vector<10x256xf32>
    %14 = math.exp %13 : vector<10x256xf32>
    %cst_9 = arith.constant dense<0.000000e+00> : vector<256xf32>
    %15 = vector.multi_reduction <add>, %14, %cst_9 [0] : vector<10x256xf32> to vector<256xf32>
    %16 = vector.shape_cast %15 : vector<256xf32> to vector<1x256xf32>
    %17 = math.log %16 : vector<1x256xf32>
    %18 = arith.addf %17, %11 : vector<1x256xf32>
    %19 = tpu.iota {dimensions = array<i32: 0>} : vector<10x256xi32>
    %20 = vector.broadcast %6 : vector<1x256xi32> to vector<10x256xi32>
    %21 = arith.cmpi eq, %19, %20 : vector<10x256xi32>
    %cst_10 = arith.constant 0.000000e+00 : f32
    %22 = vector.broadcast %cst_10 : f32 to vector<10x256xf32>
    %23 = arith.select %21, %4, %22 : vector<10x256xi1>, vector<10x256xf32>
    %cst_11 = arith.constant dense<0.000000e+00> : vector<256xf32>
    %24 = vector.multi_reduction <add>, %23, %cst_11 [0] : vector<10x256xf32> to vector<256xf32>
    %25 = vector.shape_cast %24 : vector<256xf32> to vector<1x256xf32>
    %26 = arith.subf %18, %25 : vector<1x256xf32>
    %27 = arith.mulf %26, %9 : vector<1x256xf32>
    %c0_12 = arith.constant 0 : index
    %c0_13 = arith.constant 0 : index
    %c0_14 = arith.constant 0 : index
    %28 = vector.load %arg5[%c0_12, %c0_13, %c0_14] : memref<1x1x256xf32, #tpu.memory_space<vmem>>, vector<1x1x256xf32>
    %29 = vector.shape_cast %28 : vector<1x1x256xf32> to vector<1x256xf32>
    %30 = arith.addf %29, %27 : vector<1x256xf32>
    %c0_15 = arith.constant 0 : index
    %c0_16 = arith.constant 0 : index
    %c0_17 = arith.constant 0 : index
    %31 = vector.load %arg5[%c0_15, %c0_16, %c0_17] : memref<1x1x256xf32, #tpu.memory_space<vmem>>, vector<1x1x256xf32>
    %32 = vector.shape_cast %31 : vector<1x1x256xf32> to vector<1x256xf32>
    %33 = vector.shape_cast %30 : vector<1x256xf32> to vector<1x1x256xf32>
    tpu.vector_store %arg5[%c0_15, %c0_16, %c0_17], %33 {strides = array<i32>} : memref<1x1x256xf32, #tpu.memory_space<vmem>>, vector<1x1x256xf32>,
    %c0_18 = arith.constant 0 : index
    %c0_19 = arith.constant 0 : index
    %c0_20 = arith.constant 0 : index
    %34 = vector.load %arg6[%c0_18, %c0_19, %c0_20] : memref<1x1x256xf32, #tpu.memory_space<vmem>>, vector<1x1x256xf32>
    %35 = vector.shape_cast %34 : vector<1x1x256xf32> to vector<1x256xf32>
    %36 = arith.addf %35, %9 : vector<1x256xf32>
    %c0_21 = arith.constant 0 : index
    %c0_22 = arith.constant 0 : index
    %c0_23 = arith.constant 0 : index
    %37 = vector.load %arg6[%c0_21, %c0_22, %c0_23] : memref<1x1x256xf32, #tpu.memory_space<vmem>>, vector<1x1x256xf32>
    %38 = vector.shape_cast %37 : vector<1x1x256xf32> to vector<1x256xf32>
    %39 = vector.shape_cast %36 : vector<1x256xf32> to vector<1x1x256xf32>
    tpu.vector_store %arg6[%c0_21, %c0_22, %c0_23], %39 {strides = array<i32>} : memref<1x1x256xf32, #tpu.memory_space<vmem>>, vector<1x1x256xf32>,
    return
  }
  func.func @transform_0(%arg0: i32, %arg1: i32) -> (i32, i32, i32) {
    %c0_i32 = arith.constant 0 : i32
    %c0_i32_0 = arith.constant 0 : i32
    return %arg0, %c0_i32, %arg1 : i32, i32, i32
  }
  func.func @transform_1(%arg0: i32, %arg1: i32) -> (i32, i32, i32) {
    %c0_i32 = arith.constant 0 : i32
    %c0_i32_0 = arith.constant 0 : i32
    return %arg0, %c0_i32, %arg1 : i32, i32, i32
  }
  func.func @transform_2(%arg0: i32, %arg1: i32) -> (i32, i32, i32) {
    %c0_i32 = arith.constant 0 : i32
    %c0_i32_0 = arith.constant 0 : i32
    return %arg0, %c0_i32, %arg1 : i32, i32, i32
  }
  func.func @transform_3(%arg0: i32, %arg1: i32) -> (i32, i32, i32) {
    %c0_i32 = arith.constant 0 : i32
    %c0_i32_0 = arith.constant 0 : i32
    %c0_i32_1 = arith.constant 0 : i32
    return %arg0, %c0_i32, %c0_i32_0 : i32, i32, i32
  }
  func.func @transform_4(%arg0: i32, %arg1: i32) -> (i32, i32, i32) {
    %c0_i32 = arith.constant 0 : i32
    %c0_i32_0 = arith.constant 0 : i32
    %c0_i32_1 = arith.constant 0 : i32
    return %arg0, %c0_i32, %c0_i32_0 : i32, i32, i32
  }
}

</mosaic_0001>

<llo_original>
// kernel: tpu_custom_call.1
$region0: #{tpu_custom_call.1}
  #allocation0 [shape = 'u32[]', space=smem, size = 0x4, offset = 0x4, fixed_abs, tag = 'smem constant byte address 0x4 - core index']
  #allocation1 [shape = 'u32[144,128]{1,0:T(1,128)}', space=vmem, size = 0x12000, scoped, tag = 'internal scratch']
  %s0 = inlined_call_operand.vmem [shape: f32[2,10,256], index: 0, kind: input, shape index: {}]
  %s1 = inlined_call_operand.vmem [shape: s32[2,1,256], index: 1, kind: input, shape index: {}]
  %s2 = inlined_call_operand.vmem [shape: s8[2,1,256], index: 2, kind: input, shape index: {}]
  %s3 = inlined_call_operand.hbm [shape: f32[2,1,256], index: 3, kind: output, shape index: {0}]
  %s4 = inlined_call_operand.hbm [shape: f32[2,1,256], index: 4, kind: output, shape index: {1}]
  %5 = xla_tuple %s3, %s4
  %s6 = sld [smem:[#allocation0]]
  $region57: #{tpu_custom_call.1} parent=0
    _
  %s8 = ssub.s32 1, %s6
  %s9 = scalar_select 0, %s8, %s6
  $region1: #{tpu_custom_call.1} parent=0
    #allocation2 [shape = 'u8[2048]{0}', space=vmem, size = 0x800, scoped, tag = 'output window, operand 0']
    #allocation3 [shape = 's32[2]{0}', space=sflag, size = 0x8, scoped, tag = 'scoped memory for tpu_custom_call.1']
    #allocation4 [shape = 'u8[2048]{0}', space=vmem, size = 0x800, scoped, tag = 'output window, operand 1']
    #allocation5 [shape = 's32[2]{0}', space=sflag, size = 0x8, scoped, tag = 'scoped memory for tpu_custom_call.1']
    %10 = vsyncpa [#allocation3], 0
    %s11 = scalar_lea.sflag [#allocation3], 1
    %12 = vsyncpa %s11, 0
    %13 = vsyncpa [#allocation5], 0
    %s14 = scalar_lea.sflag [#allocation5], 1
    %15 = vsyncpa %s14, 0
    loop: start=0, step=1, limit=4
    $region2: #{tpu_custom_call.1} parent=1 // loop_pre_header
      _
    $region3: #{tpu_custom_call.1} parent=1 // loop_header
      %s17 = sphi 0, %s21
      %p18 = scmp.ge.s32.totalorder %s17, 4
      %s24 = sphi 0, %s36
      %s25 = sphi 0, %s32
      %s26 = sphi 0, %s24
      %s27 = sphi 0, %s25
      %s28 = sphi 0, %s26
      %s29 = sphi 0, %s27
      %s41 = sphi 0, %s43
      %s44 = sphi 0, %s41
      %s45 = sphi 0, %s44
      %s61 = sphi 0, %s45
      %s69 = sphi 0, %s71
      %s72 = sphi 0, %s69
      %s73 = sphi 0, %s72
      %s89 = sphi 0, %s73
      %s97 = sphi 0, %s99
      %s100 = sphi 0, %s97
      %s101 = sphi 0, %s100
      %s117 = sphi 0, %s101
      %s123 = sphi 0, %s125
      %s126 = sphi 0, %s123
      %s127 = sphi 0, %s126
      %s143 = sphi 0, %s127
      %s149 = sphi 0, %s151
      %s152 = sphi 0, %s149
      %s153 = sphi 0, %s152
      %s169 = sphi 0, %s153
    $region4: #{tpu_custom_call.1} parent=1 // loop_header_branch
      %20 = sbr.rel (%p18) target = $region8
    $region5: #{tpu_custom_call.1} parent=1 // loop_body
      %s22 = ssub.s32 %s17, 1
      %s23 = ssub.s32 %s17, 2
      %s30 = sadd.s32 1, %s25
      %p31 = scmp.ge.s32.totalorder %s30, 1
      %s32 = scalar_select %p31, 0, %s30
      %s33 = sadd.s32 1, %s24
      %s34 = scalar_select %p31, %s33, %s24
      %p35 = scmp.ge.s32.totalorder %s34, 2
      %s36 = scalar_select %p35, 0, %s34
      %s37 = ssub.s32 %s24, %s36
      %s38 = ssub.s32 %s25, %s32
      %s39 = sor.u32 %s37, %s38
      %p40 = scmp.eq.s32.totalorder %s39, 0
      %s42 = sadd.s32 %s41, 1
      %s43 = scalar_select %p40, %s41, %s42
      %p46 = pneg %p40
      %p47 = scmp.eq.s32.totalorder %s17, 1
      %p48 = por %p46, %p47
      %p49 = scmp.ne.s32.totalorder %s41, %s44
      %p50 = scmp.eq.s32.totalorder %s17, 0
      %p51 = por %p49, %p50
      %p52 = scmp.ne.s32.totalorder %s41, %s44
      %p53 = scmp.eq.s32.totalorder %s22, 1
      %p54 = por %p52, %p53
      %p55 = scmp.ne.s32.totalorder %s44, %s45
      %p56 = scmp.eq.s32.totalorder %s22, 0
      %p57 = por %p55, %p56
      %p58 = scmp.ne.s32.totalorder %s44, %s45
      %p59 = scmp.eq.s32.totalorder %s23, 1
      %p60 = por %p58, %p59
      %p62 = scmp.ne.s32.totalorder %s45, %s61
      %p63 = scmp.eq.s32.totalorder %s23, 0
      %p64 = por %p62, %p63
      %s65 = ssub.s32 %s24, %s36
      %s66 = ssub.s32 %s25, %s32
      %s67 = sor.u32 %s65, %s66
      %p68 = scmp.eq.s32.totalorder %s67, 0
      %s70 = sadd.s32 %s69, 1
      %s71 = scalar_select %p68, %s69, %s70
      %p74 = pneg %p68
      %p75 = scmp.eq.s32.totalorder %s17, 1
      %p76 = por %p74, %p75
      %p77 = scmp.ne.s32.totalorder %s69, %s72
      %p78 = scmp.eq.s32.totalorder %s17, 0
      %p79 = por %p77, %p78
      %p80 = scmp.ne.s32.totalorder %s69, %s72
      %p81 = scmp.eq.s32.totalorder %s22, 1
      %p82 = por %p80, %p81
      %p83 = scmp.ne.s32.totalorder %s72, %s73
      %p84 = scmp.eq.s32.totalorder %s22, 0
      %p85 = por %p83, %p84
      %p86 = scmp.ne.s32.totalorder %s72, %s73
      %p87 = scmp.eq.s32.totalorder %s23, 1
      %p88 = por %p86, %p87
      %p90 = scmp.ne.s32.totalorder %s73, %s89
      %p91 = scmp.eq.s32.totalorder %s23, 0
      %p92 = por %p90, %p91
      %s93 = ssub.s32 %s24, %s36
      %s94 = ssub.s32 %s25, %s32
      %s95 = sor.u32 %s93, %s94
      %p96 = scmp.eq.s32.totalorder %s95, 0
      %s98 = sadd.s32 %s97, 1
      %s99 = scalar_select %p96, %s97, %s98
      %p102 = pneg %p96
      %p103 = scmp.eq.s32.totalorder %s17, 1
      %p104 = por %p102, %p103
      %p105 = scmp.ne.s32.totalorder %s97, %s100
      %p106 = scmp.eq.s32.totalorder %s17, 0
      %p107 = por %p105, %p106
      %p108 = scmp.ne.s32.totalorder %s97, %s100
      %p109 = scmp.eq.s32.totalorder %s22, 1
      %p110 = por %p108, %p109
      %p111 = scmp.ne.s32.totalorder %s100, %s101
      %p112 = scmp.eq.s32.totalorder %s22, 0
      %p113 = por %p111, %p112
      %p114 = scmp.ne.s32.totalorder %s100, %s101
      %p115 = scmp.eq.s32.totalorder %s23, 1
      %p116 = por %p114, %p115
      %p118 = scmp.ne.s32.totalorder %s101, %s117
      %p119 = scmp.eq.s32.totalorder %s23, 0
      %p120 = por %p118, %p119
      %s121 = ssub.s32 %s24, %s36
      %p122 = scmp.eq.s32.totalorder %s121, 0
      %s124 = sadd.s32 %s123, 1
      %s125 = scalar_select %p122, %s123, %s124
      %p128 = pneg %p122
      %p129 = scmp.eq.s32.totalorder %s17, 1
      %p130 = por %p128, %p129
      %p131 = scmp.ne.s32.totalorder %s123, %s126
      %p132 = scmp.eq.s32.totalorder %s17, 0
      %p133 = por %p131, %p132
      %p134 = scmp.ne.s32.totalorder %s123, %s126
      %p135 = scmp.eq.s32.totalorder %s22, 1
      %p136 = por %p134, %p135
      %p137 = scmp.ne.s32.totalorder %s126, %s127
      %p138 = scmp.eq.s32.totalorder %s22, 0
      %p139 = por %p137, %p138
      %p140 = scmp.ne.s32.totalorder %s126, %s127
      %p141 = scmp.eq.s32.totalorder %s23, 1
      %p142 = por %p140, %p141
      %p144 = scmp.ne.s32.totalorder %s127, %s143
      %p145 = scmp.eq.s32.totalorder %s23, 0
      %p146 = por %p144, %p145
      %s147 = ssub.s32 %s24, %s36
      %p148 = scmp.eq.s32.totalorder %s147, 0
      %s150 = sadd.s32 %s149, 1
      %s151 = scalar_select %p148, %s149, %s150
      %p154 = pneg %p148
      %p155 = scmp.eq.s32.totalorder %s17, 1
      %p156 = por %p154, %p155
      %p157 = scmp.ne.s32.totalorder %s149, %s152
      %p158 = scmp.eq.s32.totalorder %s17, 0
      %p159 = por %p157, %p158
      %p160 = scmp.ne.s32.totalorder %s149, %s152
      %p161 = scmp.eq.s32.totalorder %s22, 1
      %p162 = por %p160, %p161
      %p163 = scmp.ne.s32.totalorder %s152, %s153
      %p164 = scmp.eq.s32.totalorder %s22, 0
      %p165 = por %p163, %p164
      %p166 = scmp.ne.s32.totalorder %s152, %s153
      %p167 = scmp.eq.s32.totalorder %s23, 1
      %p168 = por %p166, %p167
      %p170 = scmp.ne.s32.totalorder %s153, %s169
      %p171 = scmp.eq.s32.totalorder %s23, 0
      %p172 = por %p170, %p171
      %p173 = scmp.le.s32.totalorder 1, %s17
      %p174 = scmp.lt.s32.totalorder %s17, 3
      %p175 = pnand %p173, %p174
      %p176 = pneg %p175
      // Predicated region
      $region9: #{tpu_custom_call.1} parent=5 // pred_check
        _
      $region10: #{tpu_custom_call.1} parent=5 // pred_check_branch
        %178 = sbr.rel (%p175) target = $region12
      $region11: #{tpu_custom_call.1} parent=5 // pred_region
        %s179 = ssub.s32 %s17, 1
      $region12: #{tpu_custom_call.1} parent=5 // pred_fallthru
        _
      %p180 = scmp.lt.s32.totalorder %s17, 2
      // Predicated region
      $region13: #{tpu_custom_call.1} parent=5 // pred_check
        %p181 = pneg %p180
      $region14: #{tpu_custom_call.1} parent=5 // pred_check_branch
        %183 = sbr.rel (%p181) target = $region16
      $region15: #{tpu_custom_call.1} parent=5 // pred_region
        // Predicated region
        $region17: #{tpu_custom_call.1} parent=15 // pred_check
          %p184 = pneg %p51
        $region18: #{tpu_custom_call.1} parent=15 // pred_check_branch
          %186 = sbr.rel (%p184) target = $region20
        $region19: #{tpu_custom_call.1} parent=15 // pred_region
          %s187 = smul.u32 2, %s25
          %p188 = scmp.lt.s32.totalorder %s24, 1
          %s189 = scalar_select %p188, %s24, 1
          %p190 = scmp.lt.s32.totalorder %s187, 1
          %s191 = scalar_select %p190, %s187, 1
          %s192 = smul.addr %s189, 4
          %s193 = sadd.s32 %s191, %s192
          %s194 = smul.addr %s193, 8
          %s195 = scalar_lea.vmem %s0, %s194
          %s196 = smul.u32 2, %s25
        $region20: #{tpu_custom_call.1} parent=15 // pred_fallthru
          _
        // Predicated region
        $region21: #{tpu_custom_call.1} parent=15 // pred_check
          %p197 = pneg %p79
        $region22: #{tpu_custom_call.1} parent=15 // pred_check_branch
          %199 = sbr.rel (%p197) target = $region24
        $region23: #{tpu_custom_call.1} parent=15 // pred_region
          %s200 = smul.u32 2, %s25
          %p201 = scmp.lt.s32.totalorder %s24, 1
          %s202 = scalar_select %p201, %s24, 1
          %p203 = scmp.lt.s32.totalorder %s200, 1
          %s204 = scalar_select %p203, %s200, 1
          %s205 = smul.addr %s202, 2
          %s206 = sadd.s32 %s204, %s205
          %s207 = scalar_lea.vmem %s1, %s206
          %s208 = smul.u32 2, %s25
        $region24: #{tpu_custom_call.1} parent=15 // pred_fallthru
          _
        // Predicated region
        $region25: #{tpu_custom_call.1} parent=15 // pred_check
          %p209 = pneg %p107
        $region26: #{tpu_custom_call.1} parent=15 // pred_check_branch
          %211 = sbr.rel (%p209) target = $region28
        $region27: #{tpu_custom_call.1} parent=15 // pred_region
          %s212 = smul.u32 2, %s25
          %p213 = scmp.lt.s32.totalorder %s24, 1
          %s214 = scalar_select %p213, %s24, 1
          %p215 = scmp.lt.s32.totalorder %s212, 1
          %s216 = scalar_select %p215, %s212, 1
          %s217 = smul.addr %s214, 2
          %s218 = sadd.s32 %s216, %s217
          %s219 = scalar_lea.vmem %s2, %s218
          %s220 = smul.u32 2, %s25
        $region28: #{tpu_custom_call.1} parent=15 // pred_fallthru
          _
      $region16: #{tpu_custom_call.1} parent=5 // pred_fallthru
        _
      %p221 = scmp.le.s32.totalorder 1, %s17
      %p222 = scmp.lt.s32.totalorder %s17, 3
      %p223 = pnand %p221, %p222
      %p224 = pneg %p223
      // Predicated region
      $region29: #{tpu_custom_call.1} parent=5 // pred_check
        _
      $region30: #{tpu_custom_call.1} parent=5 // pred_check_branch
        %226 = sbr.rel (%p223) target = $region32
      $region31: #{tpu_custom_call.1} parent=5 // pred_region
        %s227 = ssub.s32 %s17, 1
        %s228 = smul.u32 2, %s27
        %p229 = scmp.lt.s32.totalorder %s26, 1
        %s230 = scalar_select %p229, %s26, 1
        %p231 = scmp.lt.s32.totalorder %s228, 1
        %s232 = scalar_select %p231, %s228, 1
        %s233 = smul.addr %s230, 4
        %s234 = sadd.s32 %s232, %s233
        %s235 = smul.addr %s234, 8
        %s236 = scalar_lea.vmem %s0, %s235
        %p237 = pneg %p57
        %p238 = pneg %p54
        %s239 = smul.u32 2, %s27
        %p240 = scmp.lt.s32.totalorder %s26, 1
        %s241 = scalar_select %p240, %s26, 1
        %p242 = scmp.lt.s32.totalorder %s239, 1
        %s243 = scalar_select %p242, %s239, 1
        %s244 = smul.addr %s241, 2
        %s245 = sadd.s32 %s243, %s244
        %s246 = scalar_lea.vmem %s1, %s245
        %p247 = pneg %p85
        %p248 = pneg %p82
        %s249 = smul.u32 2, %s27
        %p250 = scmp.lt.s32.totalorder %s26, 1
        %s251 = scalar_select %p250, %s26, 1
        %p252 = scmp.lt.s32.totalorder %s249, 1
        %s253 = scalar_select %p252, %s249, 1
        %s254 = smul.addr %s251, 2
        %s255 = sadd.s32 %s253, %s254
        %s256 = scalar_lea.vmem %s2, %s255
        %p257 = pneg %p113
        %p258 = pneg %p110
        %p259 = pneg %p139
        %p260 = pneg %p136
        %s261 = sand.u32 %s126, 1
        %s262 = scalar_lea.sflag [#allocation3], %s261
        %s263 = sand.u32 %s126, 1
        %s264 = smul.addr %s263, 2
        %s265 = scalar_lea.vmem [#allocation2], %s264
        %p266 = pneg %p165
        %p267 = pneg %p162
        %s268 = sand.u32 %s152, 1
        %s269 = scalar_lea.sflag [#allocation5], %s268
        %s270 = sand.u32 %s152, 1
        %s271 = smul.addr %s270, 2
        %s272 = scalar_lea.vmem [#allocation4], %s271
        %s273 = smul.u32 2, %s27
        %p274 = scmp.lt.s32.totalorder %s26, 1
        %s275 = scalar_select %p274, %s26, 1
        %p276 = scmp.lt.s32.totalorder %s273, 1
        %s277 = scalar_select %p276, %s273, 1
        %s278 = smul.addr %s275, 4
        %s279 = sadd.s32 %s277, %s278
        %s280 = smul.addr %s279, 8
        %s281 = scalar_lea.vmem %s0, %s280
        %s282 = smul.u32 2, %s27
        %s283 = smul.u32 2, %s27
        %p284 = scmp.lt.s32.totalorder %s26, 1
        %s285 = scalar_select %p284, %s26, 1
        %p286 = scmp.lt.s32.totalorder %s283, 1
        %s287 = scalar_select %p286, %s283, 1
        %s288 = smul.addr %s285, 2
        %s289 = sadd.s32 %s287, %s288
        %s290 = scalar_lea.vmem %s1, %s289
        %s291 = smul.u32 2, %s27
        %s292 = smul.u32 2, %s27
        %p293 = scmp.lt.s32.totalorder %s26, 1
        %s294 = scalar_select %p293, %s26, 1
        %p295 = scmp.lt.s32.totalorder %s292, 1
        %s296 = scalar_select %p295, %s292, 1
        %s297 = smul.addr %s294, 2
        %s298 = sadd.s32 %s296, %s297
        %s299 = scalar_lea.vmem %s2, %s298
        %s300 = smul.u32 2, %s27
        %p301 = scmp.eq.s32.totalorder %s27, 0
        // Predicated region
        $region33: #{tpu_custom_call.1} parent=31 // pred_check
          %p302 = pneg %p301
        $region34: #{tpu_custom_call.1} parent=31 // pred_check_branch
          %304 = sbr.rel (%p302) target = $region36
        $region35: #{tpu_custom_call.1} parent=31 // pred_region
          %v305 = vlaneseq
          %vm306 = vcmp.ge.s32.totalorder %v305, 0
          %vm307 = vcmp.lt.s32.totalorder %v305, 256
          %vm308 = vmand %vm306, %vm307
          %309 = vst.msk [vmem:[%s265] sm:$0x3] %vm308, 0.0
          %310 = vst.msk [vmem:[%s272] sm:$0x3] %vm308, 0.0
        $region36: #{tpu_custom_call.1} parent=31 // pred_fallthru
          _
        %v311 = vld [vmem:[%s281] sm:$0xff]
        %v312 = vld [vmem:[%s281 + $0x8] sm:$0xff]
        %v313 = vld [vmem:[%s281 + $0x10] sm:$0x3]
        %v314 = vld [vmem:[%s281 + $0x18] sm:$0x3]
        %v315 = vld [vmem:[%s290] sm:$0x3]
        %v316 = vld [vmem:[%s299] sm:$0x3]
        %v317 = vunpack.c.0.s8 %v316
        %v318 = vcvt.s32.f32 %v317
        %vm319 = vcmask 1041408
        %v320 = vsel %vm319, %v313, -inf
        %v321 = vmax.f32 %v311, %v320
        %v322 = vrot.slane %v321, 4
        %v323 = vmax.f32 %v321, %v322
        %v324 = vrot.slane %v323, 2
        %v325 = vmax.f32 %v323, %v324
        %v326 = vrot.slane %v325, 1
        %v327 = vmax.f32 %v325, %v326
        %v328 = vsel %vm319, %v314, -inf
        %v329 = vmax.f32 %v312, %v328
        %v330 = vrot.slane %v329, 4
        %v331 = vmax.f32 %v329, %v330
        %v332 = vrot.slane %v331, 2
        %v333 = vmax.f32 %v331, %v332
        %v334 = vrot.slane %v333, 1
        %v335 = vmax.f32 %v333, %v334
        %v336 = vsub.f32 %v311, %v327
        %v337 = vsub.f32 %v312, %v335
        %v338 = vsub.f32 %v313, %v327
        %v339 = vsub.f32 %v314, %v335
        %v340 = vmul.f32 %v336, 1.442695
        %v341 = vpow.pop %v340
        %v342 = vmul.f32 %v337, 1.442695
        %v343 = vpow.pop %v342
        %v344 = vmul.f32 %v338, 1.442695
        %v345 = vpow.pop %v344
        %v346 = vmul.f32 %v339, 1.442695
        %v347 = vpow.pop %v346
        %v348 = vsel %vm319, %v345, 0.0
        %v349 = vadd.f32 %v341, %v348
        %v350 = vrot.slane %v349, 4
        %v351 = vadd.f32 %v349, %v350
        %v352 = vrot.slane %v351, 2
        %v353 = vadd.f32 %v351, %v352
        %v354 = vrot.slane %v353, 1
        %v355 = vadd.f32 %v353, %v354
        %v356 = vsel %vm319, %v347, 0.0
        %v357 = vadd.f32 %v343, %v356
        %v358 = vrot.slane %v357, 4
        %v359 = vadd.f32 %v357, %v358
        %v360 = vrot.slane %v359, 2
        %v361 = vadd.f32 %v359, %v360
        %v362 = vrot.slane %v361, 1
        %v363 = vadd.f32 %v361, %v362
        %v364 = vlog2.pop %v355
        %v365 = vmul.f32 %v364, 0.6931472
        %v366 = vlog2.pop %v363
        %v367 = vmul.f32 %v366, 0.6931472
        %v368 = vadd.f32 %v365, %v327
        %v369 = vadd.f32 %v367, %v335
        %v370 = vlaneseq
        %v371 = vshrl.u32 %v370, 7
        %v372 = vadd.s32 %v371, 8
        %v373 = vlaneseq
        %v374 = vshrl.u32 %v373, 7
        %v375 = vsub.s32 0, %v374
        %v376 = vrot.slane %v315, %v375
        %v377 = vlaneseq
        %v378 = vshrl.u32 %v377, 7
        %v379 = vsub.s32 1, %v378
        %v380 = vrot.slane %v315, %v379
        %vm381 = vcmp.eq.s32.totalorder %v371, %v376
        %vm382 = vcmp.eq.s32.totalorder %v371, %v380
        %vm383 = vcmp.eq.s32.totalorder %v372, %v376
        %vm384 = vcmp.eq.s32.totalorder %v372, %v380
        %v385 = vsel %vm381, %v311, 0.0
        %v386 = vsel %vm382, %v312, 0.0
        %v387 = vsel %vm383, %v313, 0.0
        %v388 = vsel %vm384, %v314, 0.0
        %v389 = vsel %vm319, %v387, 0.0
        %v390 = vadd.f32 %v385, %v389
        %v391 = vrot.slane %v390, 4
        %v392 = vadd.f32 %v390, %v391
        %v393 = vrot.slane %v392, 2
        %v394 = vadd.f32 %v392, %v393
        %v395 = vrot.slane %v394, 1
        %v396 = vadd.f32 %v394, %v395
        %v397 = vsel %vm319, %v388, 0.0
        %v398 = vadd.f32 %v386, %v397
        %v399 = vrot.slane %v398, 4
        %v400 = vadd.f32 %v398, %v399
        %v401 = vrot.slane %v400, 2
        %v402 = vadd.f32 %v400, %v401
        %v403 = vrot.slane %v402, 1
        %v404 = vadd.f32 %v402, %v403
        %v405 = vsub.f32 %v368, %v396
        %v406 = vsub.f32 %v369, %v404
        %v408 = vlaneseq
        %v409 = vshrl.u32 %v408, 7
        %v410 = vsub.s32 0, %v409
        %v411 = vrot.slane %v318, %v410
        %v412 = vlaneseq
        %v413 = vshrl.u32 %v412, 7
        %v414 = vsub.s32 4, %v413
        %v415 = vrot.slane %v318, %v414
        %v418 = vmul.f32 %v405, %v411
        %v419 = vmul.f32 %v406, %v415
        %v420 = vld [vmem:[%s265] sm:$0x3]
        %v423 = vcombine.low %v418, %v419
        %v425 = vunpack.c.l.s4 1966171168
        %v426 = vunpack.c.0.s8 %v425
        %v427 = vlaneseq
        %v428 = vshrl.u32 %v427, 7
        %v429 = vsub.s32 %v426, %v428
        %v430 = vrot.slane %v423, %v429
        %v432 = vunpack.c.l.s4 1966171168
        %v433 = vunpack.c.0.s8 %v432
        %v434 = vlaneseq
        %v435 = vshrl.u32 %v434, 7
        %v436 = vsub.s32 %v433, %v435
        %v437 = vrot.slane %v430, %v436
        %v439 = vadd.f32 %v420, %v437
        %v440 = vlaneseq
        %vm441 = vcmp.ge.s32.totalorder %v440, 0
        %vm442 = vcmp.lt.s32.totalorder %v440, 256
        %vm443 = vmand %vm441, %vm442
        %444 = vst.msk [vmem:[%s265] sm:$0x3] %vm443, %v439
        %v445 = vld [vmem:[%s272] sm:$0x3]
        %v447 = vunpack.c.l.s4 1966171168
        %v448 = vunpack.c.0.s8 %v447
        %v449 = vlaneseq
        %v450 = vshrl.u32 %v449, 7
        %v451 = vsub.s32 %v448, %v450
        %v452 = vrot.slane %v318, %v451
        %v454 = vunpack.c.l.s4 1966171168
        %v455 = vunpack.c.0.s8 %v454
        %v456 = vlaneseq
        %v457 = vshrl.u32 %v456, 7
        %v458 = vsub.s32 %v455, %v457
        %v459 = vrot.slane %v452, %v458
        %v461 = vadd.f32 %v445, %v459
        %462 = vst.msk [vmem:[%s272] sm:$0x3] %vm443, %v461
        %s463 = sand.u32 %s126, 1
        %s464 = scalar_lea.sflag [#allocation3], %s463
        %s465 = sand.u32 %s126, 1
        %s466 = smul.addr %s465, 2
        %s467 = scalar_lea.vmem [#allocation2], %s466
        %s468 = sand.u32 %s152, 1
        %s469 = scalar_lea.sflag [#allocation5], %s468
        %s470 = sand.u32 %s152, 1
        %s471 = smul.addr %s470, 2
        %s472 = scalar_lea.vmem [#allocation4], %s471
        // Predicated region
        $region37: #{tpu_custom_call.1} parent=31 // pred_check
          %p473 = pneg %p136
        $region38: #{tpu_custom_call.1} parent=31 // pred_check_branch
          %475 = sbr.rel (%p473) target = $region40
        $region39: #{tpu_custom_call.1} parent=31 // pred_region
          %s477 = ssub.s32 32, 32
          %478 = vsyncadd %s464, %s477
          %s479 = smul.addr %s26, 2
          %s480 = smul.addr %s479, 16
          %s481 = scalar_lea.hbm %s3, %s480
          %s483 = sshll.u32 %s467, 4
          %s484 = int_to_ptr.vmem [resolvable:$true] %s483
          %486 = dma.vmem_to_hbm [thread:$0]  %s484, 32, %s481, %s464
        $region40: #{tpu_custom_call.1} parent=31 // pred_fallthru
          _
        // Predicated region
        $region41: #{tpu_custom_call.1} parent=31 // pred_check
          %p487 = pneg %p162
        $region42: #{tpu_custom_call.1} parent=31 // pred_check_branch
          %489 = sbr.rel (%p487) target = $region44
        $region43: #{tpu_custom_call.1} parent=31 // pred_region
          %s491 = ssub.s32 32, 32
          %492 = vsyncadd %s469, %s491
          %s493 = smul.addr %s26, 2
          %s494 = smul.addr %s493, 16
          %s495 = scalar_lea.hbm %s4, %s494
          %s497 = sshll.u32 %s472, 4
          %s498 = int_to_ptr.vmem [resolvable:$true] %s497
          %500 = dma.vmem_to_hbm [thread:$0]  %s498, 32, %s495, %s469
        $region44: #{tpu_custom_call.1} parent=31 // pred_fallthru
          _
      $region32: #{tpu_custom_call.1} parent=5 // pred_fallthru
        _
      %p501 = scmp.le.s32.totalorder 2, %s17
      // Predicated region
      $region45: #{tpu_custom_call.1} parent=5 // pred_check
        %p502 = pneg %p501
      $region46: #{tpu_custom_call.1} parent=5 // pred_check_branch
        %504 = sbr.rel (%p502) target = $region48
      $region47: #{tpu_custom_call.1} parent=5 // pred_region
        %s505 = ssub.s32 %s17, 2
        // Predicated region
        $region49: #{tpu_custom_call.1} parent=47 // pred_check
          %p506 = pneg %p142
        $region50: #{tpu_custom_call.1} parent=47 // pred_check_branch
          %508 = sbr.rel (%p506) target = $region52
        $region51: #{tpu_custom_call.1} parent=47 // pred_region
          %s509 = sand.u32 %s127, 1
          %s510 = scalar_lea.sflag [#allocation3], %s509
          %s511 = sand.u32 %s127, 1
          %s512 = smul.addr %s511, 2
          %s513 = scalar_lea.vmem [#allocation2], %s512
          %514 = dma.done %s510, 32
        $region52: #{tpu_custom_call.1} parent=47 // pred_fallthru
          _
        // Predicated region
        $region53: #{tpu_custom_call.1} parent=47 // pred_check
          %p515 = pneg %p168
        $region54: #{tpu_custom_call.1} parent=47 // pred_check_branch
          %517 = sbr.rel (%p515) target = $region56
        $region55: #{tpu_custom_call.1} parent=47 // pred_region
          %s518 = sand.u32 %s153, 1
          %s519 = scalar_lea.sflag [#allocation5], %s518
          %s520 = sand.u32 %s153, 1
          %s521 = smul.addr %s520, 2
          %s522 = scalar_lea.vmem [#allocation4], %s521
          %523 = dma.done %s519, 32
        $region56: #{tpu_custom_call.1} parent=47 // pred_fallthru
          _
      $region48: #{tpu_custom_call.1} parent=5 // pred_fallthru
        _
    $region6: #{tpu_custom_call.1} parent=1 // loop_footer
      %s21 = sadd.s32 1, %s17
    $region7: #{tpu_custom_call.1} parent=1 // loop_footer_branch
      %16 = sbr.rel target = $region3
    $region8: #{tpu_custom_call.1} parent=1 // loop_exit
      _
    %524 = vsyncpa [#allocation3], 1
    %s525 = scalar_lea.sflag [#allocation3], 1
    %526 = vsyncpa %s525, 1
    %527 = vsyncpa [#allocation5], 1
    %s528 = scalar_lea.sflag [#allocation5], 1
    %529 = vsyncpa %s528, 1

</llo_original>
